<compile_context>
chip_gen: v7x
topology: tpu7x:2x2x1
jax: 0.10.0
libtpu: 0.0.40
codegen_flags: <defaults>
</compile_context>

<pallas_src>
import jax
import jax.numpy as jnp
from jax.experimental import pallas as pl
from jax.experimental.pallas import tpu as pltpu


# ----------------------------------------------------------------------------
# Fused kernel: out = c_model(s_model(x).T).T  for a block of Bt batch elements.
# All matmuls are plain 2-D MXU dots; no in-kernel reshape/transpose.
# ----------------------------------------------------------------------------
def _bias_model_kernel(x_ref,
                       ws1_ref, bs1_ref, ws2_ref, bs2_ref, ws3_ref, bs3_ref,
                       wc1_ref, bc1_ref, wc2_ref, bc2_ref, wc3_ref, bc3_ref,
                       out_ref):
    relu6 = lambda v: jnp.clip(v, 0.0, 6.0)        # f32 VPU work
    bf16 = jnp.bfloat16
    f32 = jnp.float32

    # ---- s_model on folded rows: row (b*in_ch + c) == x[b, c, :] -----------
    x = x_ref[...]                                                   # (Bt*in_ch, in_dim) bf16
    h = relu6(jnp.dot(x, ws1_ref[...],
                      preferred_element_type=f32) + bs1_ref[...])    # (Bt*in_ch, hidden)
    h = relu6(jnp.dot(h.astype(bf16), ws2_ref[...],
                      preferred_element_type=f32) + bs2_ref[...])
    s = jnp.dot(h.astype(bf16), ws3_ref[...],
                preferred_element_type=f32) + bs3_ref[...]           # (Bt*in_ch, out_dim)

    # ---- c_model across channels: both permutes folded into a LEFT multiply.
    # relu6(S^T Wc^T + bc)^T == relu6(Wc S + bc[:, None]); the Bt batch
    # elements are handled in one dot per layer via block-diagonal weights
    # (I_Bt (x) Wc), so rows stay ordered (b, channel).
    g = relu6(jnp.dot(wc1_ref[...], s.astype(bf16),
                      preferred_element_type=f32) + bc1_ref[...])    # (Bt*mid, out_dim)
    g = relu6(jnp.dot(wc2_ref[...], g.astype(bf16),
                      preferred_element_type=f32) + bc2_ref[...])    # (Bt*mid, out_dim)
    o = jnp.dot(wc3_ref[...], g.astype(bf16),
                preferred_element_type=f32) + bc3_ref[...]           # (Bt*out_ch, out_dim)

    out_ref[...] = o.astype(out_ref.dtype)


def bias_model_forward(params, x, *, batch_block=4):
    B, in_ch, in_dim = x.shape
    hidden = params["ws1"].shape[0]
    out_dim = params["ws3"].shape[0]
    mid = params["wc1"].shape[0]          # 2 * in_ch
    out_ch = params["wc3"].shape[0]

    f32, bf16 = jnp.float32, jnp.bfloat16

    Bt = min(batch_block, B)              # batch elements per grid step
    n_blk = pl.cdiv(B, Bt)
    Bp = n_blk * Bt                       # padded batch

    # Fold the batch into the matmul M dim (free row-major reshape in XLA);
    # stream x in bf16 (halves HBM traffic, bf16 MXU operands).
    x2d = x.reshape(B * in_ch, in_dim).astype(bf16)
    if Bp != B:
        x2d = jnp.pad(x2d, ((0, (Bp - B) * in_ch), (0, 0)))

    # s_model weights pre-transposed so the kernel does plain row-major x @ W.
    ws1_t = params["ws1"].T.astype(bf16)                  # (in_dim, hidden)
    ws2_t = params["ws2"].T.astype(bf16)                  # (hidden, hidden)
    ws3_t = params["ws3"].T.astype(bf16)                  # (hidden, out_dim)
    bs1 = params["bs1"][None, :]                          # (1, hidden)  f32
    bs2 = params["bs2"][None, :]                          # (1, hidden)  f32
    bs3 = params["bs3"][None, :]                          # (1, out_dim) f32

    # c_model as block-diagonal left-multiplication over the Bt block:
    # (I_Bt (x) Wc) @ S_block  ==  stack_b(Wc @ S_b).  Biases tiled to match.
    eye = jnp.eye(Bt, dtype=f32)
    wc1_bd = jnp.kron(eye, params["wc1"]).astype(bf16)    # (Bt*mid,    Bt*in_ch)
    wc2_bd = jnp.kron(eye, params["wc2"]).astype(bf16)    # (Bt*mid,    Bt*mid)
    wc3_bd = jnp.kron(eye, params["wc3"]).astype(bf16)    # (Bt*out_ch, Bt*mid)
    bc1_bd = jnp.tile(params["bc1"], Bt)[:, None]         # (Bt*mid,    1) f32
    bc2_bd = jnp.tile(params["bc2"], Bt)[:, None]         # (Bt*mid,    1) f32
    bc3_bd = jnp.tile(params["bc3"], Bt)[:, None]         # (Bt*out_ch, 1) f32

    def const(a):                                         # VMEM-resident operand
        return pl.BlockSpec(a.shape, lambda b: (0, 0))

    out2d = pl.pallas_call(
        _bias_model_kernel,
        out_shape=jax.ShapeDtypeStruct((Bp * out_ch, out_dim), f32),
        grid=(n_blk,),
        in_specs=[
            pl.BlockSpec((Bt * in_ch, in_dim), lambda b: (b, 0)),
            const(ws1_t), const(bs1), const(ws2_t), const(bs2),
            const(ws3_t), const(bs3),
            const(wc1_bd), const(bc1_bd), const(wc2_bd), const(bc2_bd),
            const(wc3_bd), const(bc3_bd),
        ],
        out_specs=pl.BlockSpec((Bt * out_ch, out_dim), lambda b: (b, 0)),
        compiler_params=pltpu.CompilerParams(
            dimension_semantics=("parallel",),
            # Explicit VMEM budget: fits comfortably inside v7x's 64 MiB
            # physical VMEM as well as v5e/v6e's 128 MiB.
            vmem_limit_bytes=32 * 1024 * 1024,
        ),
    )(x2d, ws1_t, bs1, ws2_t, bs2, ws3_t, bs3,
      wc1_bd, bc1_bd, wc2_bd, bc2_bd, wc3_bd, bc3_bd)

    if Bp != B:
        out2d = out2d[: B * out_ch]
    return out2d.reshape(B, out_ch, out_dim)   # free row-major reshape


# ----------------------------------------------------------------------------
# Parameters: all weights/biases ~ Normal(0, 0.01), mirroring the PyTorch init
# ----------------------------------------------------------------------------
def init_params(key, in_ch, out_ch, in_dim, out_dim, hidden):
    mid = 2 * in_ch
    keys = jax.random.split(key, 12)
    n = lambda k, shape: 0.01 * jax.random.normal(k, shape, jnp.float32)
    return {
        "ws1": n(keys[0], (hidden, in_dim)),   "bs1": n(keys[1], (hidden,)),
        "ws2": n(keys[2], (hidden, hidden)),   "bs2": n(keys[3], (hidden,)),
        "ws3": n(keys[4], (out_dim, hidden)),  "bs3": n(keys[5], (out_dim,)),
        "wc1": n(keys[6], (mid, in_ch)),       "bc1": n(keys[7], (mid,)),
        "wc2": n(keys[8], (mid, mid)),         "bc2": n(keys[9], (mid,)),
        "wc3": n(keys[10], (out_ch, mid)),     "bc3": n(keys[11], (out_ch,)),
    }


# ----------------------------------------------------------------------------
# Pure-JAX f32 reference: direct port of the PyTorch forward (with the permutes)
# ----------------------------------------------------------------------------
def reference_forward(params, x):
    relu6 = lambda v: jnp.clip(v, 0.0, 6.0)
    h = relu6(jnp.einsum("bcd,hd->bch", x, params["ws1"]) + params["bs1"])
    h = relu6(jnp.einsum("bch,gh->bcg", h, params["ws2"]) + params["bs2"])
    s = jnp.einsum("bcg,og->bco", h, params["ws3"]) + params["bs3"]    # (B, in_ch, out_dim)
    p = jnp.transpose(s, (0, 2, 1))                                    # (B, out_dim, in_ch)
    g = relu6(jnp.einsum("bdc,ec->bde", p, params["wc1"]) + params["bc1"])
    g = relu6(jnp.einsum("bde,fe->bdf", g, params["wc2"]) + params["bc2"])
    c = jnp.einsum("bdf,of->bdo", g, params["wc3"]) + params["bc3"]    # (B, out_dim, out_ch)
    return jnp.transpose(c, (0, 2, 1))                                 # (B, out_ch, out_dim)


if __name__ == "__main__":
    # Small shapes consistent with the module; B chosen so the batch grid has
    # >= 4 parallel steps (Bt = 4 batch elements per step).
    B, in_ch, out_ch = 16, 4, 8
    in_dim, out_dim, hidden = 16, 16, 32

    key = jax.random.PRNGKey(0)
    kx, kp = jax.random.split(key)
    x = jax.random.normal(kx, (B, in_ch, in_dim), jnp.float32)
    params = init_params(kp, in_ch, out_ch, in_dim, out_dim, hidden)

    out = bias_model_forward(params, x, batch_block=4)
    out = jax.block_until_ready(out)

    ref = reference_forward(params, x)
    assert out.shape == (B, out_ch, out_dim)
    # Tolerance loosened vs the f32 reference because MXU operands are bf16
    # (f32 accumulation); observed error is ~1e-6, so this is still a tight check.
    assert jnp.allclose(out, ref, rtol=1e-2, atol=1e-4), float(jnp.max(jnp.abs(out - ref)))

    print("KERNEL_OK")
</pallas_src>

<mosaic_0001>
module attributes {stable_mosaic.version = 11 : i64} {
  func.func @_bias_model_kernel(%arg0: i32, %arg1: memref<16x16xbf16, #tpu.memory_space<vmem>>, %arg2: memref<16x32xbf16, #tpu.memory_space<vmem>>, %arg3: memref<1x32xf32, #tpu.memory_space<vmem>>, %arg4: memref<32x32xbf16, #tpu.memory_space<vmem>>, %arg5: memref<1x32xf32, #tpu.memory_space<vmem>>, %arg6: memref<32x16xbf16, #tpu.memory_space<vmem>>, %arg7: memref<1x16xf32, #tpu.memory_space<vmem>>, %arg8: memref<32x16xbf16, #tpu.memory_space<vmem>>, %arg9: memref<32x1xf32, #tpu.memory_space<vmem>>, %arg10: memref<32x32xbf16, #tpu.memory_space<vmem>>, %arg11: memref<32x1xf32, #tpu.memory_space<vmem>>, %arg12: memref<32x32xbf16, #tpu.memory_space<vmem>>, %arg13: memref<32x1xf32, #tpu.memory_space<vmem>>, %arg14: memref<32x16xf32, #tpu.memory_space<vmem>>) attributes {dimension_semantics = [#tpu.dimension_semantics<parallel>], iteration_bounds = array<i64: 4>, scalar_prefetch = 0 : i64, scratch_operands = 0 : i64, tpu.core_type = #tpu.core_type<tc>, window_params = [{transform_indices = @transform_0, window_bounds = array<i64: 16, 16>}, {pipeline_mode = #tpu.pipeline_mode<synchronous>, transform_indices = @transform_1, window_bounds = array<i64: 16, 32>}, {pipeline_mode = #tpu.pipeline_mode<synchronous>, transform_indices = @transform_2, window_bounds = array<i64: 1, 32>}, {pipeline_mode = #tpu.pipeline_mode<synchronous>, transform_indices = @transform_3, window_bounds = array<i64: 32, 32>}, {pipeline_mode = #tpu.pipeline_mode<synchronous>, transform_indices = @transform_4, window_bounds = array<i64: 1, 32>}, {pipeline_mode = #tpu.pipeline_mode<synchronous>, transform_indices = @transform_5, window_bounds = array<i64: 32, 16>}, {pipeline_mode = #tpu.pipeline_mode<synchronous>, transform_indices = @transform_6, window_bounds = array<i64: 1, 16>}, {pipeline_mode = #tpu.pipeline_mode<synchronous>, transform_indices = @transform_7, window_bounds = array<i64: 32, 16>}, {pipeline_mode = #tpu.pipeline_mode<synchronous>, transform_indices = @transform_8, window_bounds = array<i64: 32, 1>}, {pipeline_mode = #tpu.pipeline_mode<synchronous>, transform_indices = @transform_9, window_bounds = array<i64: 32, 32>}, {pipeline_mode = #tpu.pipeline_mode<synchronous>, transform_indices = @transform_10, window_bounds = array<i64: 32, 1>}, {pipeline_mode = #tpu.pipeline_mode<synchronous>, transform_indices = @transform_11, window_bounds = array<i64: 32, 32>}, {pipeline_mode = #tpu.pipeline_mode<synchronous>, transform_indices = @transform_12, window_bounds = array<i64: 32, 1>}, {transform_indices = @transform_13, window_bounds = array<i64: 32, 16>}]} {
    %c0 = arith.constant 0 : index
    %c0_0 = arith.constant 0 : index
    %0 = vector.load %arg1[%c0, %c0_0] : memref<16x16xbf16, #tpu.memory_space<vmem>>, vector<16x16xbf16>
    %c0_1 = arith.constant 0 : index
    %c0_2 = arith.constant 0 : index
    %1 = vector.load %arg2[%c0_1, %c0_2] : memref<16x32xbf16, #tpu.memory_space<vmem>>, vector<16x32xbf16>
    %cst = arith.constant dense<0.000000e+00> : vector<16x32xf32>
    %2 = tpu.matmul %0, %1, %cst {dimension_numbers = #tpu.dot_dimension_numbers<[1], [0], [0], [1], [0, 0, 1, 1], [], []>} : vector<16x16xbf16>, vector<16x32xbf16>, vector<16x32xf32> -> vector<16x32xf32>
    %c0_3 = arith.constant 0 : index
    %c0_4 = arith.constant 0 : index
    %3 = vector.load %arg3[%c0_3, %c0_4] : memref<1x32xf32, #tpu.memory_space<vmem>>, vector<1x32xf32>
    %4 = vector.broadcast %3 : vector<1x32xf32> to vector<16x32xf32>
    %5 = arith.addf %2, %4 : vector<16x32xf32>
    %cst_5 = arith.constant 0.000000e+00 : f32
    %cst_6 = arith.constant 6.000000e+00 : f32
    %6 = vector.broadcast %cst_5 : f32 to vector<16x32xf32>
    %7 = arith.maximumf %6, %5 : vector<16x32xf32>
    %8 = vector.broadcast %cst_6 : f32 to vector<16x32xf32>
    %9 = arith.minimumf %8, %7 : vector<16x32xf32>
    %10 = arith.truncf %9 : vector<16x32xf32> to vector<16x32xbf16>
    %c0_7 = arith.constant 0 : index
    %c0_8 = arith.constant 0 : index
    %11 = vector.load %arg4[%c0_7, %c0_8] : memref<32x32xbf16, #tpu.memory_space<vmem>>, vector<32x32xbf16>
    %cst_9 = arith.constant dense<0.000000e+00> : vector<16x32xf32>
    %12 = tpu.matmul %10, %11, %cst_9 {dimension_numbers = #tpu.dot_dimension_numbers<[1], [0], [0], [1], [0, 0, 1, 1], [], []>} : vector<16x32xbf16>, vector<32x32xbf16>, vector<16x32xf32> -> vector<16x32xf32>
    %c0_10 = arith.constant 0 : index
    %c0_11 = arith.constant 0 : index
    %13 = vector.load %arg5[%c0_10, %c0_11] : memref<1x32xf32, #tpu.memory_space<vmem>>, vector<1x32xf32>
    %14 = vector.broadcast %13 : vector<1x32xf32> to vector<16x32xf32>
    %15 = arith.addf %12, %14 : vector<16x32xf32>
    %cst_12 = arith.constant 0.000000e+00 : f32
    %cst_13 = arith.constant 6.000000e+00 : f32
    %16 = vector.broadcast %cst_12 : f32 to vector<16x32xf32>
    %17 = arith.maximumf %16, %15 : vector<16x32xf32>
    %18 = vector.broadcast %cst_13 : f32 to vector<16x32xf32>
    %19 = arith.minimumf %18, %17 : vector<16x32xf32>
    %20 = arith.truncf %19 : vector<16x32xf32> to vector<16x32xbf16>
    %c0_14 = arith.constant 0 : index
    %c0_15 = arith.constant 0 : index
    %21 = vector.load %arg6[%c0_14, %c0_15] : memref<32x16xbf16, #tpu.memory_space<vmem>>, vector<32x16xbf16>
    %cst_16 = arith.constant dense<0.000000e+00> : vector<16x16xf32>
    %22 = tpu.matmul %20, %21, %cst_16 {dimension_numbers = #tpu.dot_dimension_numbers<[1], [0], [0], [1], [0, 0, 1, 1], [], []>} : vector<16x32xbf16>, vector<32x16xbf16>, vector<16x16xf32> -> vector<16x16xf32>
    %c0_17 = arith.constant 0 : index
    %c0_18 = arith.constant 0 : index
    %23 = vector.load %arg7[%c0_17, %c0_18] : memref<1x16xf32, #tpu.memory_space<vmem>>, vector<1x16xf32>
    %24 = vector.broadcast %23 : vector<1x16xf32> to vector<16x16xf32>
    %25 = arith.addf %22, %24 : vector<16x16xf32>
    %c0_19 = arith.constant 0 : index
    %c0_20 = arith.constant 0 : index
    %26 = vector.load %arg8[%c0_19, %c0_20] : memref<32x16xbf16, #tpu.memory_space<vmem>>, vector<32x16xbf16>
    %27 = arith.truncf %25 : vector<16x16xf32> to vector<16x16xbf16>
    %cst_21 = arith.constant dense<0.000000e+00> : vector<32x16xf32>
    %28 = tpu.matmul %26, %27, %cst_21 {dimension_numbers = #tpu.dot_dimension_numbers<[1], [0], [0], [1], [0, 0, 1, 1], [], []>} : vector<32x16xbf16>, vector<16x16xbf16>, vector<32x16xf32> -> vector<32x16xf32>
    %c0_22 = arith.constant 0 : index
    %c0_23 = arith.constant 0 : index
    %29 = vector.load %arg9[%c0_22, %c0_23] : memref<32x1xf32, #tpu.memory_space<vmem>>, vector<32x1xf32>
    %30 = vector.broadcast %29 : vector<32x1xf32> to vector<32x16xf32>
    %31 = arith.addf %28, %30 : vector<32x16xf32>
    %cst_24 = arith.constant 0.000000e+00 : f32
    %cst_25 = arith.constant 6.000000e+00 : f32
    %32 = vector.broadcast %cst_24 : f32 to vector<32x16xf32>
    %33 = arith.maximumf %32, %31 : vector<32x16xf32>
    %34 = vector.broadcast %cst_25 : f32 to vector<32x16xf32>
    %35 = arith.minimumf %34, %33 : vector<32x16xf32>
    %c0_26 = arith.constant 0 : index
    %c0_27 = arith.constant 0 : index
    %36 = vector.load %arg10[%c0_26, %c0_27] : memref<32x32xbf16, #tpu.memory_space<vmem>>, vector<32x32xbf16>
    %37 = arith.truncf %35 : vector<32x16xf32> to vector<32x16xbf16>
    %cst_28 = arith.constant dense<0.000000e+00> : vector<32x16xf32>
    %38 = tpu.matmul %36, %37, %cst_28 {dimension_numbers = #tpu.dot_dimension_numbers<[1], [0], [0], [1], [0, 0, 1, 1], [], []>} : vector<32x32xbf16>, vector<32x16xbf16>, vector<32x16xf32> -> vector<32x16xf32>
    %c0_29 = arith.constant 0 : index
    %c0_30 = arith.constant 0 : index
    %39 = vector.load %arg11[%c0_29, %c0_30] : memref<32x1xf32, #tpu.memory_space<vmem>>, vector<32x1xf32>
    %40 = vector.broadcast %39 : vector<32x1xf32> to vector<32x16xf32>
    %41 = arith.addf %38, %40 : vector<32x16xf32>
    %cst_31 = arith.constant 0.000000e+00 : f32
    %cst_32 = arith.constant 6.000000e+00 : f32
    %42 = vector.broadcast %cst_31 : f32 to vector<32x16xf32>
    %43 = arith.maximumf %42, %41 : vector<32x16xf32>
    %44 = vector.broadcast %cst_32 : f32 to vector<32x16xf32>
    %45 = arith.minimumf %44, %43 : vector<32x16xf32>
    %c0_33 = arith.constant 0 : index
    %c0_34 = arith.constant 0 : index
    %46 = vector.load %arg12[%c0_33, %c0_34] : memref<32x32xbf16, #tpu.memory_space<vmem>>, vector<32x32xbf16>
    %47 = arith.truncf %45 : vector<32x16xf32> to vector<32x16xbf16>
    %cst_35 = arith.constant dense<0.000000e+00> : vector<32x16xf32>
    %48 = tpu.matmul %46, %47, %cst_35 {dimension_numbers = #tpu.dot_dimension_numbers<[1], [0], [0], [1], [0, 0, 1, 1], [], []>} : vector<32x32xbf16>, vector<32x16xbf16>, vector<32x16xf32> -> vector<32x16xf32>
    %c0_36 = arith.constant 0 : index
    %c0_37 = arith.constant 0 : index
    %49 = vector.load %arg13[%c0_36, %c0_37] : memref<32x1xf32, #tpu.memory_space<vmem>>, vector<32x1xf32>
    %50 = vector.broadcast %49 : vector<32x1xf32> to vector<32x16xf32>
    %51 = arith.addf %48, %50 : vector<32x16xf32>
    %c0_38 = arith.constant 0 : index
    %c0_39 = arith.constant 0 : index
    %52 = vector.load %arg14[%c0_38, %c0_39] : memref<32x16xf32, #tpu.memory_space<vmem>>, vector<32x16xf32>
    tpu.vector_store %arg14[%c0_38, %c0_39], %51 {strides = array<i32>} : memref<32x16xf32, #tpu.memory_space<vmem>>, vector<32x16xf32>,
    return
  }
  func.func @transform_0(%arg0: i32) -> (i32, i32) {
    %c0_i32 = arith.constant 0 : i32
    %c0_i32_0 = arith.constant 0 : i32
    return %arg0, %c0_i32 : i32, i32
  }
  func.func @transform_1(%arg0: i32) -> (i32, i32) {
    %c0_i32 = arith.constant 0 : i32
    %c0_i32_0 = arith.constant 0 : i32
    %c0_i32_1 = arith.constant 0 : i32
    return %c0_i32, %c0_i32_0 : i32, i32
  }
  func.func @transform_2(%arg0: i32) -> (i32, i32) {
    %c0_i32 = arith.constant 0 : i32
    %c0_i32_0 = arith.constant 0 : i32
    %c0_i32_1 = arith.constant 0 : i32
    return %c0_i32, %c0_i32_0 : i32, i32
  }
  func.func @transform_3(%arg0: i32) -> (i32, i32) {
    %c0_i32 = arith.constant 0 : i32
    %c0_i32_0 = arith.constant 0 : i32
    %c0_i32_1 = arith.constant 0 : i32
    return %c0_i32, %c0_i32_0 : i32, i32
  }
  func.func @transform_4(%arg0: i32) -> (i32, i32) {
    %c0_i32 = arith.constant 0 : i32
    %c0_i32_0 = arith.constant 0 : i32
    %c0_i32_1 = arith.constant 0 : i32
    return %c0_i32, %c0_i32_0 : i32, i32
  }
  func.func @transform_5(%arg0: i32) -> (i32, i32) {
    %c0_i32 = arith.constant 0 : i32
    %c0_i32_0 = arith.constant 0 : i32
    %c0_i32_1 = arith.constant 0 : i32
    return %c0_i32, %c0_i32_0 : i32, i32
  }
  func.func @transform_6(%arg0: i32) -> (i32, i32) {
    %c0_i32 = arith.constant 0 : i32
    %c0_i32_0 = arith.constant 0 : i32
    %c0_i32_1 = arith.constant 0 : i32
    return %c0_i32, %c0_i32_0 : i32, i32
  }
  func.func @transform_7(%arg0: i32) -> (i32, i32) {
    %c0_i32 = arith.constant 0 : i32
    %c0_i32_0 = arith.constant 0 : i32
    %c0_i32_1 = arith.constant 0 : i32
    return %c0_i32, %c0_i32_0 : i32, i32
  }
  func.func @transform_8(%arg0: i32) -> (i32, i32) {
    %c0_i32 = arith.constant 0 : i32
    %c0_i32_0 = arith.constant 0 : i32
    %c0_i32_1 = arith.constant 0 : i32
    return %c0_i32, %c0_i32_0 : i32, i32
  }
  func.func @transform_9(%arg0: i32) -> (i32, i32) {
    %c0_i32 = arith.constant 0 : i32
    %c0_i32_0 = arith.constant 0 : i32
    %c0_i32_1 = arith.constant 0 : i32
    return %c0_i32, %c0_i32_0 : i32, i32
  }
  func.func @transform_10(%arg0: i32) -> (i32, i32) {
    %c0_i32 = arith.constant 0 : i32
    %c0_i32_0 = arith.constant 0 : i32
    %c0_i32_1 = arith.constant 0 : i32
    return %c0_i32, %c0_i32_0 : i32, i32
  }
  func.func @transform_11(%arg0: i32) -> (i32, i32) {
    %c0_i32 = arith.constant 0 : i32
    %c0_i32_0 = arith.constant 0 : i32
    %c0_i32_1 = arith.constant 0 : i32
    return %c0_i32, %c0_i32_0 : i32, i32
  }
  func.func @transform_12(%arg0: i32) -> (i32, i32) {
    %c0_i32 = arith.constant 0 : i32
    %c0_i32_0 = arith.constant 0 : i32
    %c0_i32_1 = arith.constant 0 : i32
    return %c0_i32, %c0_i32_0 : i32, i32
  }
  func.func @transform_13(%arg0: i32) -> (i32, i32) {
    %c0_i32 = arith.constant 0 : i32
    %c0_i32_0 = arith.constant 0 : i32
    return %arg0, %c0_i32 : i32, i32
  }
}

</mosaic_0001>

<llo_original>
// kernel: tpu_custom_call.1
$region0: #{tpu_custom_call.1}
  #allocation0 [shape = 'u32[]', space=smem, size = 0x4, offset = 0x4, fixed_abs, tag = 'smem constant byte address 0x4 - core index']
  #allocation1 [shape = 'u32[144,128]{1,0:T(1,128)}', space=vmem, size = 0x12000, scoped, tag = 'internal scratch']
  %s0 = inlined_call_operand.vmem [shape: bf16[64,16], index: 0, kind: input, shape index: {}]
  %s1 = inlined_call_operand.vmem [shape: bf16[16,32], index: 1, kind: input, shape index: {}]
  %s2 = inlined_call_operand.vmem [shape: f32[1,32], index: 2, kind: input, shape index: {}]
  %s3 = inlined_call_operand.vmem [shape: bf16[32,32], index: 3, kind: input, shape index: {}]
  %s4 = inlined_call_operand.vmem [shape: f32[1,32], index: 4, kind: input, shape index: {}]
  %s5 = inlined_call_operand.vmem [shape: bf16[32,16], index: 5, kind: input, shape index: {}]
  %s6 = inlined_call_operand.vmem [shape: f32[1,16], index: 6, kind: input, shape index: {}]
  %s7 = inlined_call_operand.vmem [shape: bf16[32,16], index: 7, kind: input, shape index: {}]
  %s8 = inlined_call_operand.vmem [shape: f32[32,1], index: 8, kind: input, shape index: {}]
  %s9 = inlined_call_operand.vmem [shape: bf16[32,32], index: 9, kind: input, shape index: {}]
  %s10 = inlined_call_operand.vmem [shape: f32[32,1], index: 10, kind: input, shape index: {}]
  %s11 = inlined_call_operand.vmem [shape: bf16[32,32], index: 11, kind: input, shape index: {}]
  %s12 = inlined_call_operand.vmem [shape: f32[32,1], index: 12, kind: input, shape index: {}]
  %s13 = inlined_call_operand.vmem [shape: f32[128,16], index: 13, kind: output, shape index: {}]
  %s14 = sld [smem:[#allocation0]]
  $region85: #{tpu_custom_call.1} parent=0
    _
  %s16 = ssub.s32 1, %s14
  %s17 = scalar_select 0, %s16, %s14
  loop: start=0, step=1, limit=6
  $region2: #{tpu_custom_call.1} parent=0 // loop_pre_header
    _
  $region3: #{tpu_custom_call.1} parent=0 // loop_header
    %s19 = sphi 0, %s23
    %p20 = scmp.ge.s32.totalorder %s19, 6
    %s29 = sphi 0, %s31
    %s32 = sphi 0, %s29
    %s33 = sphi 0, %s32
    %s49 = sphi 0, %s33
    %s53 = sphi 0, %s53
    %s55 = sphi 0, %s53
    %s56 = sphi 0, %s55
    %s70 = sphi 0, %s56
    %s74 = sphi 0, %s74
    %s76 = sphi 0, %s74
    %s77 = sphi 0, %s76
    %s91 = sphi 0, %s77
    %s95 = sphi 0, %s95
    %s97 = sphi 0, %s95
    %s98 = sphi 0, %s97
    %s112 = sphi 0, %s98
    %s116 = sphi 0, %s116
    %s118 = sphi 0, %s116
    %s119 = sphi 0, %s118
    %s133 = sphi 0, %s119
    %s137 = sphi 0, %s137
    %s139 = sphi 0, %s137
    %s140 = sphi 0, %s139
    %s154 = sphi 0, %s140
    %s158 = sphi 0, %s158
    %s160 = sphi 0, %s158
    %s161 = sphi 0, %s160
    %s175 = sphi 0, %s161
    %s179 = sphi 0, %s179
    %s181 = sphi 0, %s179
    %s182 = sphi 0, %s181
    %s196 = sphi 0, %s182
    %s200 = sphi 0, %s200
    %s202 = sphi 0, %s200
    %s203 = sphi 0, %s202
    %s217 = sphi 0, %s203
    %s221 = sphi 0, %s221
    %s223 = sphi 0, %s221
    %s224 = sphi 0, %s223
    %s238 = sphi 0, %s224
    %s242 = sphi 0, %s242
    %s244 = sphi 0, %s242
    %s245 = sphi 0, %s244
    %s259 = sphi 0, %s245
    %s263 = sphi 0, %s263
    %s265 = sphi 0, %s263
    %s266 = sphi 0, %s265
    %s280 = sphi 0, %s266
    %s284 = sphi 0, %s284
    %s286 = sphi 0, %s284
    %s287 = sphi 0, %s286
    %s301 = sphi 0, %s287
    %s307 = sphi 0, %s309
    %s310 = sphi 0, %s307
    %s311 = sphi 0, %s310
    %s327 = sphi 0, %s311
  $region4: #{tpu_custom_call.1} parent=0 // loop_header_branch
    %22 = sbr.rel (%p20) target = $region8
  $region5: #{tpu_custom_call.1} parent=0 // loop_body
    %s24 = ssub.s32 %s19, 1
    %s25 = ssub.s32 %s19, 2
    %s26 = sadd.s32 %s19, 1
    %s27 = ssub.s32 %s19, %s26
    %p28 = scmp.eq.s32.totalorder %s27, 0
    %s30 = sadd.s32 %s29, 1
    %s31 = scalar_select %p28, %s29, %s30
    %p34 = pneg %p28
    %p35 = scmp.eq.s32.totalorder %s19, 3
    %p36 = por %p34, %p35
    %p37 = scmp.ne.s32.totalorder %s29, %s32
    %p38 = scmp.eq.s32.totalorder %s19, 0
    %p39 = por %p37, %p38
    %p40 = scmp.ne.s32.totalorder %s29, %s32
    %p41 = scmp.eq.s32.totalorder %s24, 3
    %p42 = por %p40, %p41
    %p43 = scmp.ne.s32.totalorder %s32, %s33
    %p44 = scmp.eq.s32.totalorder %s24, 0
    %p45 = por %p43, %p44
    %p46 = scmp.ne.s32.totalorder %s32, %s33
    %p47 = scmp.eq.s32.totalorder %s25, 3
    %p48 = por %p46, %p47
    %p50 = scmp.ne.s32.totalorder %s33, %s49
    %p51 = scmp.eq.s32.totalorder %s25, 0
    %p52 = por %p50, %p51
    %s54 = sadd.s32 %s53, 1
    %p57 = scmp.eq.s32.totalorder %s19, 3
    %p58 = scmp.ne.s32.totalorder %s53, %s55
    %p59 = scmp.eq.s32.totalorder %s19, 0
    %p60 = por %p58, %p59
    %p61 = scmp.ne.s32.totalorder %s53, %s55
    %p62 = scmp.eq.s32.totalorder %s24, 3
    %p63 = por %p61, %p62
    %p64 = scmp.ne.s32.totalorder %s55, %s56
    %p65 = scmp.eq.s32.totalorder %s24, 0
    %p66 = por %p64, %p65
    %p67 = scmp.ne.s32.totalorder %s55, %s56
    %p68 = scmp.eq.s32.totalorder %s25, 3
    %p69 = por %p67, %p68
    %p71 = scmp.ne.s32.totalorder %s56, %s70
    %p72 = scmp.eq.s32.totalorder %s25, 0
    %p73 = por %p71, %p72
    %s75 = sadd.s32 %s74, 1
    %p78 = scmp.eq.s32.totalorder %s19, 3
    %p79 = scmp.ne.s32.totalorder %s74, %s76
    %p80 = scmp.eq.s32.totalorder %s19, 0
    %p81 = por %p79, %p80
    %p82 = scmp.ne.s32.totalorder %s74, %s76
    %p83 = scmp.eq.s32.totalorder %s24, 3
    %p84 = por %p82, %p83
    %p85 = scmp.ne.s32.totalorder %s76, %s77
    %p86 = scmp.eq.s32.totalorder %s24, 0
    %p87 = por %p85, %p86
    %p88 = scmp.ne.s32.totalorder %s76, %s77
    %p89 = scmp.eq.s32.totalorder %s25, 3
    %p90 = por %p88, %p89
    %p92 = scmp.ne.s32.totalorder %s77, %s91
    %p93 = scmp.eq.s32.totalorder %s25, 0
    %p94 = por %p92, %p93
    %s96 = sadd.s32 %s95, 1
    %p99 = scmp.eq.s32.totalorder %s19, 3
    %p100 = scmp.ne.s32.totalorder %s95, %s97
    %p101 = scmp.eq.s32.totalorder %s19, 0
    %p102 = por %p100, %p101
    %p103 = scmp.ne.s32.totalorder %s95, %s97
    %p104 = scmp.eq.s32.totalorder %s24, 3
    %p105 = por %p103, %p104
    %p106 = scmp.ne.s32.totalorder %s97, %s98
    %p107 = scmp.eq.s32.totalorder %s24, 0
    %p108 = por %p106, %p107
    %p109 = scmp.ne.s32.totalorder %s97, %s98
    %p110 = scmp.eq.s32.totalorder %s25, 3
    %p111 = por %p109, %p110
    %p113 = scmp.ne.s32.totalorder %s98, %s112
    %p114 = scmp.eq.s32.totalorder %s25, 0
    %p115 = por %p113, %p114
    %s117 = sadd.s32 %s116, 1
    %p120 = scmp.eq.s32.totalorder %s19, 3
    %p121 = scmp.ne.s32.totalorder %s116, %s118
    %p122 = scmp.eq.s32.totalorder %s19, 0
    %p123 = por %p121, %p122
    %p124 = scmp.ne.s32.totalorder %s116, %s118
    %p125 = scmp.eq.s32.totalorder %s24, 3
    %p126 = por %p124, %p125
    %p127 = scmp.ne.s32.totalorder %s118, %s119
    %p128 = scmp.eq.s32.totalorder %s24, 0
    %p129 = por %p127, %p128
    %p130 = scmp.ne.s32.totalorder %s118, %s119
    %p131 = scmp.eq.s32.totalorder %s25, 3
    %p132 = por %p130, %p131
    %p134 = scmp.ne.s32.totalorder %s119, %s133
    %p135 = scmp.eq.s32.totalorder %s25, 0
    %p136 = por %p134, %p135
    %s138 = sadd.s32 %s137, 1
    %p141 = scmp.eq.s32.totalorder %s19, 3
    %p142 = scmp.ne.s32.totalorder %s137, %s139
    %p143 = scmp.eq.s32.totalorder %s19, 0
    %p144 = por %p142, %p143
    %p145 = scmp.ne.s32.totalorder %s137, %s139
    %p146 = scmp.eq.s32.totalorder %s24, 3
    %p147 = por %p145, %p146
    %p148 = scmp.ne.s32.totalorder %s139, %s140
    %p149 = scmp.eq.s32.totalorder %s24, 0
    %p150 = por %p148, %p149
    %p151 = scmp.ne.s32.totalorder %s139, %s140
    %p152 = scmp.eq.s32.totalorder %s25, 3
    %p153 = por %p151, %p152
    %p155 = scmp.ne.s32.totalorder %s140, %s154
    %p156 = scmp.eq.s32.totalorder %s25, 0
    %p157 = por %p155, %p156
    %s159 = sadd.s32 %s158, 1
    %p162 = scmp.eq.s32.totalorder %s19, 3
    %p163 = scmp.ne.s32.totalorder %s158, %s160
    %p164 = scmp.eq.s32.totalorder %s19, 0
    %p165 = por %p163, %p164
    %p166 = scmp.ne.s32.totalorder %s158, %s160
    %p167 = scmp.eq.s32.totalorder %s24, 3
    %p168 = por %p166, %p167
    %p169 = scmp.ne.s32.totalorder %s160, %s161
    %p170 = scmp.eq.s32.totalorder %s24, 0
    %p171 = por %p169, %p170
    %p172 = scmp.ne.s32.totalorder %s160, %s161
    %p173 = scmp.eq.s32.totalorder %s25, 3
    %p174 = por %p172, %p173
    %p176 = scmp.ne.s32.totalorder %s161, %s175
    %p177 = scmp.eq.s32.totalorder %s25, 0
    %p178 = por %p176, %p177
    %s180 = sadd.s32 %s179, 1
    %p183 = scmp.eq.s32.totalorder %s19, 3
    %p184 = scmp.ne.s32.totalorder %s179, %s181
    %p185 = scmp.eq.s32.totalorder %s19, 0
    %p186 = por %p184, %p185
    %p187 = scmp.ne.s32.totalorder %s179, %s181
    %p188 = scmp.eq.s32.totalorder %s24, 3
    %p189 = por %p187, %p188
    %p190 = scmp.ne.s32.totalorder %s181, %s182
    %p191 = scmp.eq.s32.totalorder %s24, 0
    %p192 = por %p190, %p191
    %p193 = scmp.ne.s32.totalorder %s181, %s182
    %p194 = scmp.eq.s32.totalorder %s25, 3
    %p195 = por %p193, %p194
    %p197 = scmp.ne.s32.totalorder %s182, %s196
    %p198 = scmp.eq.s32.totalorder %s25, 0
    %p199 = por %p197, %p198
    %s201 = sadd.s32 %s200, 1
    %p204 = scmp.eq.s32.totalorder %s19, 3
    %p205 = scmp.ne.s32.totalorder %s200, %s202
    %p206 = scmp.eq.s32.totalorder %s19, 0
    %p207 = por %p205, %p206
    %p208 = scmp.ne.s32.totalorder %s200, %s202
    %p209 = scmp.eq.s32.totalorder %s24, 3
    %p210 = por %p208, %p209
    %p211 = scmp.ne.s32.totalorder %s202, %s203
    %p212 = scmp.eq.s32.totalorder %s24, 0
    %p213 = por %p211, %p212
    %p214 = scmp.ne.s32.totalorder %s202, %s203
    %p215 = scmp.eq.s32.totalorder %s25, 3
    %p216 = por %p214, %p215
    %p218 = scmp.ne.s32.totalorder %s203, %s217
    %p219 = scmp.eq.s32.totalorder %s25, 0
    %p220 = por %p218, %p219
    %s222 = sadd.s32 %s221, 1
    %p225 = scmp.eq.s32.totalorder %s19, 3
    %p226 = scmp.ne.s32.totalorder %s221, %s223
    %p227 = scmp.eq.s32.totalorder %s19, 0
    %p228 = por %p226, %p227
    %p229 = scmp.ne.s32.totalorder %s221, %s223
    %p230 = scmp.eq.s32.totalorder %s24, 3
    %p231 = por %p229, %p230
    %p232 = scmp.ne.s32.totalorder %s223, %s224
    %p233 = scmp.eq.s32.totalorder %s24, 0
    %p234 = por %p232, %p233
    %p235 = scmp.ne.s32.totalorder %s223, %s224
    %p236 = scmp.eq.s32.totalorder %s25, 3
    %p237 = por %p235, %p236
    %p239 = scmp.ne.s32.totalorder %s224, %s238
    %p240 = scmp.eq.s32.totalorder %s25, 0
    %p241 = por %p239, %p240
    %s243 = sadd.s32 %s242, 1
    %p246 = scmp.eq.s32.totalorder %s19, 3
    %p247 = scmp.ne.s32.totalorder %s242, %s244
    %p248 = scmp.eq.s32.totalorder %s19, 0
    %p249 = por %p247, %p248
    %p250 = scmp.ne.s32.totalorder %s242, %s244
    %p251 = scmp.eq.s32.totalorder %s24, 3
    %p252 = por %p250, %p251
    %p253 = scmp.ne.s32.totalorder %s244, %s245
    %p254 = scmp.eq.s32.totalorder %s24, 0
    %p255 = por %p253, %p254
    %p256 = scmp.ne.s32.totalorder %s244, %s245
    %p257 = scmp.eq.s32.totalorder %s25, 3
    %p258 = por %p256, %p257
    %p260 = scmp.ne.s32.totalorder %s245, %s259
    %p261 = scmp.eq.s32.totalorder %s25, 0
    %p262 = por %p260, %p261
    %s264 = sadd.s32 %s263, 1
    %p267 = scmp.eq.s32.totalorder %s19, 3
    %p268 = scmp.ne.s32.totalorder %s263, %s265
    %p269 = scmp.eq.s32.totalorder %s19, 0
    %p270 = por %p268, %p269
    %p271 = scmp.ne.s32.totalorder %s263, %s265
    %p272 = scmp.eq.s32.totalorder %s24, 3
    %p273 = por %p271, %p272
    %p274 = scmp.ne.s32.totalorder %s265, %s266
    %p275 = scmp.eq.s32.totalorder %s24, 0
    %p276 = por %p274, %p275
    %p277 = scmp.ne.s32.totalorder %s265, %s266
    %p278 = scmp.eq.s32.totalorder %s25, 3
    %p279 = por %p277, %p278
    %p281 = scmp.ne.s32.totalorder %s266, %s280
    %p282 = scmp.eq.s32.totalorder %s25, 0
    %p283 = por %p281, %p282
    %s285 = sadd.s32 %s284, 1
    %p288 = scmp.eq.s32.totalorder %s19, 3
    %p289 = scmp.ne.s32.totalorder %s284, %s286
    %p290 = scmp.eq.s32.totalorder %s19, 0
    %p291 = por %p289, %p290
    %p292 = scmp.ne.s32.totalorder %s284, %s286
    %p293 = scmp.eq.s32.totalorder %s24, 3
    %p294 = por %p292, %p293
    %p295 = scmp.ne.s32.totalorder %s286, %s287
    %p296 = scmp.eq.s32.totalorder %s24, 0
    %p297 = por %p295, %p296
    %p298 = scmp.ne.s32.totalorder %s286, %s287
    %p299 = scmp.eq.s32.totalorder %s25, 3
    %p300 = por %p298, %p299
    %p302 = scmp.ne.s32.totalorder %s287, %s301
    %p303 = scmp.eq.s32.totalorder %s25, 0
    %p304 = por %p302, %p303
    %s305 = ssub.s32 %s19, %s26
    %p306 = scmp.eq.s32.totalorder %s305, 0
    %s308 = sadd.s32 %s307, 1
    %s309 = scalar_select %p306, %s307, %s308
    %p312 = pneg %p306
    %p313 = scmp.eq.s32.totalorder %s19, 3
    %p314 = por %p312, %p313
    %p315 = scmp.ne.s32.totalorder %s307, %s310
    %p316 = scmp.eq.s32.totalorder %s19, 0
    %p317 = por %p315, %p316
    %p318 = scmp.ne.s32.totalorder %s307, %s310
    %p319 = scmp.eq.s32.totalorder %s24, 3
    %p320 = por %p318, %p319
    %p321 = scmp.ne.s32.totalorder %s310, %s311
    %p322 = scmp.eq.s32.totalorder %s24, 0
    %p323 = por %p321, %p322
    %p324 = scmp.ne.s32.totalorder %s310, %s311
    %p325 = scmp.eq.s32.totalorder %s25, 3
    %p326 = por %p324, %p325
    %p328 = scmp.ne.s32.totalorder %s311, %s327
    %p329 = scmp.eq.s32.totalorder %s25, 0
    %p330 = por %p328, %p329
    %p331 = scmp.le.s32.totalorder 1, %s19
    %p332 = scmp.lt.s32.totalorder %s19, 5
    %p333 = pnand %p331, %p332
    %p334 = pneg %p333
    // Predicated region
    $region9: #{tpu_custom_call.1} parent=5 // pred_check
      _
    $region10: #{tpu_custom_call.1} parent=5 // pred_check_branch
      %336 = sbr.rel (%p333) target = $region12
    $region11: #{tpu_custom_call.1} parent=5 // pred_region
      %s337 = ssub.s32 %s19, 1
      // Predicated region
      $region13: #{tpu_custom_call.1} parent=11 // pred_check
        %p338 = pneg %p66
      $region14: #{tpu_custom_call.1} parent=11 // pred_check_branch
        %340 = sbr.rel (%p338) target = $region16
      $region15: #{tpu_custom_call.1} parent=11 // pred_region
        _
      $region16: #{tpu_custom_call.1} parent=11 // pred_fallthru
        _
      // Predicated region
      $region17: #{tpu_custom_call.1} parent=11 // pred_check
        %p341 = pneg %p87
      $region18: #{tpu_custom_call.1} parent=11 // pred_check_branch
        %343 = sbr.rel (%p341) target = $region20
      $region19: #{tpu_custom_call.1} parent=11 // pred_region
        _
      $region20: #{tpu_custom_call.1} parent=11 // pred_fallthru
        _
      // Predicated region
      $region21: #{tpu_custom_call.1} parent=11 // pred_check
        %p344 = pneg %p108
      $region22: #{tpu_custom_call.1} parent=11 // pred_check_branch
        %346 = sbr.rel (%p344) target = $region24
      $region23: #{tpu_custom_call.1} parent=11 // pred_region
        _
      $region24: #{tpu_custom_call.1} parent=11 // pred_fallthru
        _
      // Predicated region
      $region25: #{tpu_custom_call.1} parent=11 // pred_check
        %p347 = pneg %p129
      $region26: #{tpu_custom_call.1} parent=11 // pred_check_branch
        %349 = sbr.rel (%p347) target = $region28
      $region27: #{tpu_custom_call.1} parent=11 // pred_region
        _
      $region28: #{tpu_custom_call.1} parent=11 // pred_fallthru
        _
      // Predicated region
      $region29: #{tpu_custom_call.1} parent=11 // pred_check
        %p350 = pneg %p150
      $region30: #{tpu_custom_call.1} parent=11 // pred_check_branch
        %352 = sbr.rel (%p350) target = $region32
      $region31: #{tpu_custom_call.1} parent=11 // pred_region
        _
      $region32: #{tpu_custom_call.1} parent=11 // pred_fallthru
        _
      // Predicated region
      $region33: #{tpu_custom_call.1} parent=11 // pred_check
        %p353 = pneg %p171
      $region34: #{tpu_custom_call.1} parent=11 // pred_check_branch
        %355 = sbr.rel (%p353) target = $region36
      $region35: #{tpu_custom_call.1} parent=11 // pred_region
        _
      $region36: #{tpu_custom_call.1} parent=11 // pred_fallthru
        _
      // Predicated region
      $region37: #{tpu_custom_call.1} parent=11 // pred_check
        %p356 = pneg %p192
      $region38: #{tpu_custom_call.1} parent=11 // pred_check_branch
        %358 = sbr.rel (%p356) target = $region40
      $region39: #{tpu_custom_call.1} parent=11 // pred_region
        _
      $region40: #{tpu_custom_call.1} parent=11 // pred_fallthru
        _
      // Predicated region
      $region41: #{tpu_custom_call.1} parent=11 // pred_check
        %p359 = pneg %p213
      $region42: #{tpu_custom_call.1} parent=11 // pred_check_branch
        %361 = sbr.rel (%p359) target = $region44
      $region43: #{tpu_custom_call.1} parent=11 // pred_region
        _
      $region44: #{tpu_custom_call.1} parent=11 // pred_fallthru
        _
      // Predicated region
      $region45: #{tpu_custom_call.1} parent=11 // pred_check
        %p362 = pneg %p234
      $region46: #{tpu_custom_call.1} parent=11 // pred_check_branch
        %364 = sbr.rel (%p362) target = $region48
      $region47: #{tpu_custom_call.1} parent=11 // pred_region
        _
      $region48: #{tpu_custom_call.1} parent=11 // pred_fallthru
        _
      // Predicated region
      $region49: #{tpu_custom_call.1} parent=11 // pred_check
        %p365 = pneg %p255
      $region50: #{tpu_custom_call.1} parent=11 // pred_check_branch
        %367 = sbr.rel (%p365) target = $region52
      $region51: #{tpu_custom_call.1} parent=11 // pred_region
        _
      $region52: #{tpu_custom_call.1} parent=11 // pred_fallthru
        _
      // Predicated region
      $region53: #{tpu_custom_call.1} parent=11 // pred_check
        %p368 = pneg %p276
      $region54: #{tpu_custom_call.1} parent=11 // pred_check_branch
        %370 = sbr.rel (%p368) target = $region56
      $region55: #{tpu_custom_call.1} parent=11 // pred_region
        _
      $region56: #{tpu_custom_call.1} parent=11 // pred_fallthru
        _
      // Predicated region
      $region57: #{tpu_custom_call.1} parent=11 // pred_check
        %p371 = pneg %p297
      $region58: #{tpu_custom_call.1} parent=11 // pred_check_branch
        %373 = sbr.rel (%p371) target = $region60
      $region59: #{tpu_custom_call.1} parent=11 // pred_region
        _
      $region60: #{tpu_custom_call.1} parent=11 // pred_fallthru
        _
    $region12: #{tpu_custom_call.1} parent=5 // pred_fallthru
      _
    %p374 = scmp.lt.s32.totalorder %s19, 4
    // Predicated region
    $region61: #{tpu_custom_call.1} parent=5 // pred_check
      %p375 = pneg %p374
    $region62: #{tpu_custom_call.1} parent=5 // pred_check_branch
      %377 = sbr.rel (%p375) target = $region64
    $region63: #{tpu_custom_call.1} parent=5 // pred_region
      // Predicated region
      $region65: #{tpu_custom_call.1} parent=63 // pred_check
        %p378 = pneg %p39
      $region66: #{tpu_custom_call.1} parent=63 // pred_check_branch
        %380 = sbr.rel (%p378) target = $region68
      $region67: #{tpu_custom_call.1} parent=63 // pred_region
        %s381 = smul.u32 2, %s19
        %p382 = scmp.lt.s32.totalorder %s381, 7
        %s383 = scalar_select %p382, %s381, 7
        %s384 = smul.addr %s383, 4
        %s385 = scalar_lea.vmem %s0, %s384
        %s386 = smul.u32 2, %s19
      $region68: #{tpu_custom_call.1} parent=63 // pred_fallthru
        _
    $region64: #{tpu_custom_call.1} parent=5 // pred_fallthru
      _
    %p387 = scmp.le.s32.totalorder 1, %s19
    %p388 = scmp.lt.s32.totalorder %s19, 5
    %p389 = pnand %p387, %p388
    %p390 = pneg %p389
    // Predicated region
    $region69: #{tpu_custom_call.1} parent=5 // pred_check
      _
    $region70: #{tpu_custom_call.1} parent=5 // pred_check_branch
      %392 = sbr.rel (%p389) target = $region72
    $region71: #{tpu_custom_call.1} parent=5 // pred_region
      %s393 = ssub.s32 %s19, 1
      %s394 = smul.u32 2, %s24
      %p395 = scmp.lt.s32.totalorder %s394, 7
      %s396 = scalar_select %p395, %s394, 7
      %s397 = smul.addr %s396, 4
      %s398 = scalar_lea.vmem %s0, %s397
      %p399 = pneg %p45
      %p400 = pneg %p42
      %p401 = pneg %p66
      %p402 = pneg %p63
      %p403 = pneg %p87
      %p404 = pneg %p84
      %p405 = pneg %p108
      %p406 = pneg %p105
      %p407 = pneg %p129
      %p408 = pneg %p126
      %p409 = pneg %p150
      %p410 = pneg %p147
      %p411 = pneg %p171
      %p412 = pneg %p168
      %p413 = pneg %p192
      %p414 = pneg %p189
      %p415 = pneg %p213
      %p416 = pneg %p210
      %p417 = pneg %p234
      %p418 = pneg %p231
      %p419 = pneg %p255
      %p420 = pneg %p252
      %p421 = pneg %p276
      %p422 = pneg %p273
      %p423 = pneg %p297
      %p424 = pneg %p294
      %p425 = pneg %p323
      %p426 = pneg %p320
      %s427 = smul.u32 4, %s24
      %p428 = scmp.lt.s32.totalorder %s427, 15
      %s429 = scalar_select %p428, %s427, 15
      %s430 = smul.addr %s429, 8
      %s431 = scalar_lea.vmem %s13, %s430
      %s432 = smul.u32 2, %s24
      %p433 = scmp.lt.s32.totalorder %s432, 7
      %s434 = scalar_select %p433, %s432, 7
      %s435 = smul.addr %s434, 4
      %s436 = scalar_lea.vmem %s0, %s435
      %s437 = smul.u32 2, %s24
      %s438 = smul.u32 4, %s24
      %p439 = scmp.lt.s32.totalorder %s438, 15
      %s440 = scalar_select %p439, %s438, 15
      %s441 = smul.addr %s440, 8
      %s442 = scalar_lea.vmem %s13, %s441
      %s443 = smul.u32 4, %s24
      %v445 = vld [vmem:[%s436] sm:$0xf]
      %v446 = vld [vmem:[%s436 + $0x4] sm:$0xf]
      %v447 = vld [vmem:[%s1] sm:$0xf]
      %v448 = vld [vmem:[%s1 + $0x4] sm:$0xf]
      %v449 = vld [vmem:[%s2] sm:$0x1]
      %v451 = vlaneseq
      %v452 = vshrl.u32 %v451, 7
      %v453 = vsub.s32 0, %v452
      %v454 = vrot.slane %v449, %v453
      %v458 = vunpack.c.l.b16 %v445
      %v459 = vunpack.c.l.b16 %v446
      %v460 = vpack.c.b16 %v459, %v458
      %v463 = vunpack.c.l.b16 %v447
      %v464 = vunpack.c.l.b16 %v448
      %v465 = vpack.c.b16 %v464, %v463
      %vm467 = vcmask 130048
      %v469 = vsel %vm467, %v460, 0
      %471 = vmatprep.subr.bf16.mxu0 0
      %472 = vmatpush1.bf16.msra.mxu0 %v465
      %473 = vmatprep.subr.bf16.mxu0 0
      %474 = vmatpush1.bf16.msra.mxu0 0
      %475 = vmatprep.subr.bf16.mxu0 0
      %476 = vmatpush1.bf16.msra.mxu0 0
      %477 = vmatprep.subr.bf16.mxu0 0
      %478 = vmatpush1.bf16.msra.mxu0 0
      %479 = vmatprep.subr.bf16.mxu0 0
      %480 = vmatpush1.bf16.msra.mxu0 0
      %481 = vmatprep.subr.bf16.mxu0 0
      %482 = vmatpush1.bf16.msra.mxu0 0
      %483 = vmatprep.subr.bf16.mxu0 0
      %484 = vmatpush1.bf16.msra.mxu0 0
      %485 = vmatprep.subr.bf16.mxu0 0
      %486 = vmatpush1.bf16.msra.mxu0 0
      %487 = vmatprep.subr.bf16.mxu0 0
      %488 = vmatpush1.bf16.msra.mxu0 0
      %489 = vmatprep.subr.bf16.mxu0 0
      %490 = vmatpush1.bf16.msra.mxu0 0
      %491 = vmatprep.subr.bf16.mxu0 0
      %492 = vmatpush1.bf16.msra.mxu0 0
      %493 = vmatprep.subr.bf16.mxu0 0
      %494 = vmatpush1.bf16.msra.mxu0 0
      %495 = vmatprep.subr.bf16.mxu0 0
      %496 = vmatpush1.bf16.msra.mxu0 0
      %497 = vmatprep.subr.bf16.mxu0 0
      %498 = vmatpush1.bf16.msra.mxu0 0
      %499 = vmatprep.subr.bf16.mxu0 0
      %500 = vmatpush1.bf16.msra.mxu0 0
      %501 = vmatprep.subr.bf16.mxu0 0
      %502 = vmatpush1.bf16.msra.mxu0 0
      %503 = vmatprep.mubr.bf16.mxu0 0
      %504 = vmatmul.mubr.bf16.gmra.mrb[0].mxu0 %v469
      %v505 = vpop.f32.mrb[0].mxu0
      %v506 = vadd.f32 %v454, %v505
      %v507 = vpop.f32.mrb[0].mxu0
      %v508 = vpop.f32.mrb[0].mxu0
      %v509 = vadd.f32 %v454, %v508
      %v510 = vpop.f32.mrb[0].mxu0
      %511 = vdwg.mxu0
      %v512 = vmax.f32 %v506, 0.0
      %v513 = vmax.f32 %v509, 0.0
      %v514 = vmin.f32 %v512, 6.0
      %v515 = vmin.f32 %v513, 6.0
      %v516 = vpack.c.bf16 %v515, %v514
      %v517 = vld [vmem:[%s3] sm:$0xf]
      %v518 = vld [vmem:[%s3 + $0x4] sm:$0xf]
      %v519 = vld [vmem:[%s3 + $0x8] sm:$0xf]
      %v520 = vld [vmem:[%s3 + $0xc] sm:$0xf]
      %v521 = vld [vmem:[%s4] sm:$0x1]
      %v523 = vlaneseq
      %v524 = vshrl.u32 %v523, 7
      %v525 = vsub.s32 0, %v524
      %v526 = vrot.slane %v521, %v525
      %v532 = vunpack.c.l.b16 %v517
      %v533 = vunpack.c.l.b16 %v518
      %v534 = vunpack.c.l.b16 %v519
      %v535 = vunpack.c.l.b16 %v520
      %v536 = vpack.c.b16 %v533, %v532
      %v537 = vpack.c.b16 %v535, %v534
      %vm540 = vcmask 261120
      %v542 = vsel %vm540, %v516, 0
      %544 = vmatprep.subr.bf16.mxu0 0
      %545 = vmatpush1.bf16.msra.mxu0 %v536
      %546 = vmatprep.subr.bf16.mxu0 0
      %547 = vmatpush1.bf16.msra.mxu0 %v537
      %548 = vmatprep.subr.bf16.mxu0 0
      %549 = vmatpush1.bf16.msra.mxu0 0
      %550 = vmatprep.subr.bf16.mxu0 0
      %551 = vmatpush1.bf16.msra.mxu0 0
      %552 = vmatprep.subr.bf16.mxu0 0
      %553 = vmatpush1.bf16.msra.mxu0 0
      %554 = vmatprep.subr.bf16.mxu0 0
      %555 = vmatpush1.bf16.msra.mxu0 0
      %556 = vmatprep.subr.bf16.mxu0 0
      %557 = vmatpush1.bf16.msra.mxu0 0
      %558 = vmatprep.subr.bf16.mxu0 0
      %559 = vmatpush1.bf16.msra.mxu0 0
      %560 = vmatprep.subr.bf16.mxu0 0
      %561 = vmatpush1.bf16.msra.mxu0 0
      %562 = vmatprep.subr.bf16.mxu0 0
      %563 = vmatpush1.bf16.msra.mxu0 0
      %564 = vmatprep.subr.bf16.mxu0 0
      %565 = vmatpush1.bf16.msra.mxu0 0
      %566 = vmatprep.subr.bf16.mxu0 0
      %567 = vmatpush1.bf16.msra.mxu0 0
      %568 = vmatprep.subr.bf16.mxu0 0
      %569 = vmatpush1.bf16.msra.mxu0 0
      %570 = vmatprep.subr.bf16.mxu0 0
      %571 = vmatpush1.bf16.msra.mxu0 0
      %572 = vmatprep.subr.bf16.mxu0 0
      %573 = vmatpush1.bf16.msra.mxu0 0
      %574 = vmatprep.subr.bf16.mxu0 0
      %575 = vmatpush1.bf16.msra.mxu0 0
      %576 = vmatprep.mubr.bf16.mxu0 0
      %577 = vmatmul.mubr.bf16.gmra.mrb[0].mxu0 %v542
      %v578 = vpop.f32.mrb[0].mxu0
      %v579 = vadd.f32 %v526, %v578
      %v580 = vpop.f32.mrb[0].mxu0
      %v581 = vpop.f32.mrb[0].mxu0
      %v582 = vadd.f32 %v526, %v581
      %v583 = vpop.f32.mrb[0].mxu0
      %584 = vdwg.mxu0
      %v585 = vmax.f32 %v579, 0.0
      %v586 = vmax.f32 %v582, 0.0
      %v587 = vmin.f32 %v585, 6.0
      %v588 = vmin.f32 %v586, 6.0
      %v589 = vpack.c.bf16 %v588, %v587
      %v590 = vld [vmem:[%s5] sm:$0xf]
      %v591 = vld [vmem:[%s5 + $0x4] sm:$0xf]
      %v592 = vld [vmem:[%s5 + $0x8] sm:$0xf]
      %v593 = vld [vmem:[%s5 + $0xc] sm:$0xf]
      %v594 = vld [vmem:[%s6] sm:$0x1]
      %v596 = vlaneseq
      %v597 = vshrl.u32 %v596, 7
      %v598 = vsub.s32 0, %v597
      %v599 = vrot.slane %v594, %v598
      %v605 = vunpack.c.l.b16 %v590
      %v606 = vunpack.c.l.b16 %v591
      %v607 = vunpack.c.l.b16 %v592
      %v608 = vunpack.c.l.b16 %v593
      %v609 = vpack.c.b16 %v606, %v605
      %v610 = vpack.c.b16 %v608, %v607
      %v614 = vsel %vm540, %v589, 0
      %616 = vmatprep.subr.bf16.mxu0 0
      %617 = vmatpush1.bf16.msra.mxu0 %v609
      %618 = vmatprep.subr.bf16.mxu0 0
      %619 = vmatpush1.bf16.msra.mxu0 %v610
      %620 = vmatprep.subr.bf16.mxu0 0
      %621 = vmatpush1.bf16.msra.mxu0 0
      %622 = vmatprep.subr.bf16.mxu0 0
      %623 = vmatpush1.bf16.msra.mxu0 0
      %624 = vmatprep.subr.bf16.mxu0 0
      %625 = vmatpush1.bf16.msra.mxu0 0
      %626 = vmatprep.subr.bf16.mxu0 0
      %627 = vmatpush1.bf16.msra.mxu0 0
      %628 = vmatprep.subr.bf16.mxu0 0
      %629 = vmatpush1.bf16.msra.mxu0 0
      %630 = vmatprep.subr.bf16.mxu0 0
      %631 = vmatpush1.bf16.msra.mxu0 0
      %632 = vmatprep.subr.bf16.mxu0 0
      %633 = vmatpush1.bf16.msra.mxu0 0
      %634 = vmatprep.subr.bf16.mxu0 0
      %635 = vmatpush1.bf16.msra.mxu0 0
      %636 = vmatprep.subr.bf16.mxu0 0
      %637 = vmatpush1.bf16.msra.mxu0 0
      %638 = vmatprep.subr.bf16.mxu0 0
      %639 = vmatpush1.bf16.msra.mxu0 0
      %640 = vmatprep.subr.bf16.mxu0 0
      %641 = vmatpush1.bf16.msra.mxu0 0
      %642 = vmatprep.subr.bf16.mxu0 0
      %643 = vmatpush1.bf16.msra.mxu0 0
      %644 = vmatprep.subr.bf16.mxu0 0
      %645 = vmatpush1.bf16.msra.mxu0 0
      %646 = vmatprep.subr.bf16.mxu0 0
      %647 = vmatpush1.bf16.msra.mxu0 0
      %648 = vmatprep.mubr.bf16.mxu0 0
      %649 = vmatmul.mubr.bf16.gmra.mrb[0].mxu0 %v614
      %v650 = vpop.f32.mrb[0].mxu0
      %v651 = vadd.f32 %v599, %v650
      %v652 = vpop.f32.mrb[0].mxu0
      %v653 = vpop.f32.mrb[0].mxu0
      %v654 = vadd.f32 %v599, %v653
      %v655 = vpop.f32.mrb[0].mxu0
      %656 = vdwg.mxu0
      %v657 = vld [vmem:[%s7] sm:$0xf]
      %v658 = vld [vmem:[%s7 + $0x4] sm:$0xf]
      %v659 = vld [vmem:[%s7 + $0x8] sm:$0xf]
      %v660 = vld [vmem:[%s7 + $0xc] sm:$0xf]
      %v661 = vpack.c.bf16 %v654, %v651
      %v662 = vld [vmem:[%s8] sm:$0xff]
      %v663 = vld [vmem:[%s8 + $0x8] sm:$0xff]
      %v664 = vld [vmem:[%s8 + $0x10] sm:$0xff]
      %v665 = vld [vmem:[%s8 + $0x18] sm:$0xff]
      %667 = vset.pattern.permute.xlu0 0
      %668 = vperm.xlu0 %667, %v662
      %v669 = vpop.permute.xlu0 %668
      %672 = vset.pattern.permute.xlu0 0
      %673 = vperm.xlu0 %672, %v663
      %v674 = vpop.permute.xlu0 %673
      %677 = vset.pattern.permute.xlu0 0
      %678 = vperm.xlu0 %677, %v664
      %v679 = vpop.permute.xlu0 %678
      %682 = vset.pattern.permute.xlu0 0
      %683 = vperm.xlu0 %682, %v665
      %v684 = vpop.permute.xlu0 %683
      %v690 = vunpack.c.l.b16 %v657
      %v691 = vunpack.c.l.b16 %v658
      %v692 = vunpack.c.l.b16 %v659
      %v693 = vunpack.c.l.b16 %v660
      %v694 = vpack.c.b16 %v691, %v690
      %v695 = vpack.c.b16 %v693, %v692
      %v697 = vsel %vm467, %v694, 0
      %v700 = vsel %vm467, %v695, 0
      %702 = vmatprep.subr.bf16.mxu0 0
      %703 = vmatpush1.bf16.msra.mxu0 %v661
      %704 = vmatprep.subr.bf16.mxu0 0
      %705 = vmatpush1.bf16.msra.mxu0 0
      %706 = vmatprep.subr.bf16.mxu0 0
      %707 = vmatpush1.bf16.msra.mxu0 0
      %708 = vmatprep.subr.bf16.mxu0 0
      %709 = vmatpush1.bf16.msra.mxu0 0
      %710 = vmatprep.subr.bf16.mxu0 0
      %711 = vmatpush1.bf16.msra.mxu0 0
      %712 = vmatprep.subr.bf16.mxu0 0
      %713 = vmatpush1.bf16.msra.mxu0 0
      %714 = vmatprep.subr.bf16.mxu0 0
      %715 = vmatpush1.bf16.msra.mxu0 0
      %716 = vmatprep.subr.bf16.mxu0 0
      %717 = vmatpush1.bf16.msra.mxu0 0
      %718 = vmatprep.subr.bf16.mxu0 0
      %719 = vmatpush1.bf16.msra.mxu0 0
      %720 = vmatprep.subr.bf16.mxu0 0
      %721 = vmatpush1.bf16.msra.mxu0 0
      %722 = vmatprep.subr.bf16.mxu0 0
      %723 = vmatpush1.bf16.msra.mxu0 0
      %724 = vmatprep.subr.bf16.mxu0 0
      %725 = vmatpush1.bf16.msra.mxu0 0
      %726 = vmatprep.subr.bf16.mxu0 0
      %727 = vmatpush1.bf16.msra.mxu0 0
      %728 = vmatprep.subr.bf16.mxu0 0
      %729 = vmatpush1.bf16.msra.mxu0 0
      %730 = vmatprep.subr.bf16.mxu0 0
      %731 = vmatpush1.bf16.msra.mxu0 0
      %732 = vmatprep.subr.bf16.mxu0 0
      %733 = vmatpush1.bf16.msra.mxu0 0
      %734 = vmatprep.mubr.bf16.mxu0 0
      %735 = vmatmul.mubr.bf16.gmra.mrb[0].mxu0 %v697
      %v736 = vpop.f32.mrb[0].mxu0
      %v737 = vadd.f32 %v669, %v736
      %v738 = vpop.f32.mrb[0].mxu0
      %v739 = vpop.f32.mrb[0].mxu0
      %v740 = vadd.f32 %v674, %v739
      %v741 = vpop.f32.mrb[0].mxu0
      %742 = vmatprep.mubr.bf16.mxu0 0
      %743 = vmatmul.mubr.bf16.gmra.mrb[0].mxu0 %v700
      %v744 = vpop.f32.mrb[0].mxu0
      %v745 = vadd.f32 %v679, %v744
      %v746 = vpop.f32.mrb[0].mxu0
      %v747 = vpop.f32.mrb[0].mxu0
      %v748 = vadd.f32 %v684, %v747
      %v749 = vpop.f32.mrb[0].mxu0
      %750 = vdwg.mxu0
      %v751 = vmax.f32 %v737, 0.0
      %v752 = vmax.f32 %v740, 0.0
      %v753 = vmax.f32 %v745, 0.0
      %v754 = vmax.f32 %v748, 0.0
      %v755 = vmin.f32 %v751, 6.0
      %v756 = vmin.f32 %v752, 6.0
      %v757 = vmin.f32 %v753, 6.0
      %v758 = vmin.f32 %v754, 6.0
      %v759 = vld [vmem:[%s9] sm:$0xf]
      %v760 = vld [vmem:[%s9 + $0x4] sm:$0xf]
      %v761 = vld [vmem:[%s9 + $0x8] sm:$0xf]
      %v762 = vld [vmem:[%s9 + $0xc] sm:$0xf]
      %v763 = vpack.c.bf16 %v756, %v755
      %v764 = vpack.c.bf16 %v758, %v757
      %v765 = vld [vmem:[%s10] sm:$0xff]
      %v766 = vld [vmem:[%s10 + $0x8] sm:$0xff]
      %v767 = vld [vmem:[%s10 + $0x10] sm:$0xff]
      %v768 = vld [vmem:[%s10 + $0x18] sm:$0xff]
      %770 = vset.pattern.permute.xlu0 0
      %771 = vperm.xlu0 %770, %v765
      %v772 = vpop.permute.xlu0 %771
      %775 = vset.pattern.permute.xlu0 0
      %776 = vperm.xlu0 %775, %v766
      %v777 = vpop.permute.xlu0 %776
      %780 = vset.pattern.permute.xlu0 0
      %781 = vperm.xlu0 %780, %v767
      %v782 = vpop.permute.xlu0 %781
      %785 = vset.pattern.permute.xlu0 0
      %786 = vperm.xlu0 %785, %v768
      %v787 = vpop.permute.xlu0 %786
      %v793 = vunpack.c.l.b16 %v759
      %v794 = vunpack.c.l.b16 %v760
      %v795 = vunpack.c.l.b16 %v761
      %v796 = vunpack.c.l.b16 %v762
      %v797 = vpack.c.b16 %v794, %v793
      %v798 = vpack.c.b16 %v796, %v795
      %v800 = vsel %vm540, %v797, 0
      %v803 = vsel %vm540, %v798, 0
      %805 = vmatprep.subr.bf16.mxu0 0
      %806 = vmatpush1.bf16.msra.mxu0 %v763
      %807 = vmatprep.subr.bf16.mxu0 0
      %808 = vmatpush1.bf16.msra.mxu0 %v764
      %809 = vmatprep.subr.bf16.mxu0 0
      %810 = vmatpush1.bf16.msra.mxu0 0
      %811 = vmatprep.subr.bf16.mxu0 0
      %812 = vmatpush1.bf16.msra.mxu0 0
      %813 = vmatprep.subr.bf16.mxu0 0
      %814 = vmatpush1.bf16.msra.mxu0 0
      %815 = vmatprep.subr.bf16.mxu0 0
      %816 = vmatpush1.bf16.msra.mxu0 0
      %817 = vmatprep.subr.bf16.mxu0 0
      %818 = vmatpush1.bf16.msra.mxu0 0
      %819 = vmatprep.subr.bf16.mxu0 0
      %820 = vmatpush1.bf16.msra.mxu0 0
      %821 = vmatprep.subr.bf16.mxu0 0
      %822 = vmatpush1.bf16.msra.mxu0 0
      %823 = vmatprep.subr.bf16.mxu0 0
      %824 = vmatpush1.bf16.msra.mxu0 0
      %825 = vmatprep.subr.bf16.mxu0 0
      %826 = vmatpush1.bf16.msra.mxu0 0
      %827 = vmatprep.subr.bf16.mxu0 0
      %828 = vmatpush1.bf16.msra.mxu0 0
      %829 = vmatprep.subr.bf16.mxu0 0
      %830 = vmatpush1.bf16.msra.mxu0 0
      %831 = vmatprep.subr.bf16.mxu0 0
      %832 = vmatpush1.bf16.msra.mxu0 0
      %833 = vmatprep.subr.bf16.mxu0 0
      %834 = vmatpush1.bf16.msra.mxu0 0
      %835 = vmatprep.subr.bf16.mxu0 0
      %836 = vmatpush1.bf16.msra.mxu0 0
      %837 = vmatprep.mubr.bf16.mxu0 0
      %838 = vmatmul.mubr.bf16.gmra.mrb[0].mxu0 %v800
      %v839 = vpop.f32.mrb[0].mxu0
      %v840 = vadd.f32 %v772, %v839
      %v841 = vpop.f32.mrb[0].mxu0
      %v842 = vpop.f32.mrb[0].mxu0
      %v843 = vadd.f32 %v777, %v842
      %v844 = vpop.f32.mrb[0].mxu0
      %845 = vmatprep.mubr.bf16.mxu0 0
      %846 = vmatmul.mubr.bf16.gmra.mrb[0].mxu0 %v803
      %v847 = vpop.f32.mrb[0].mxu0
      %v848 = vadd.f32 %v782, %v847
      %v849 = vpop.f32.mrb[0].mxu0
      %v850 = vpop.f32.mrb[0].mxu0
      %v851 = vadd.f32 %v787, %v850
      %v852 = vpop.f32.mrb[0].mxu0
      %853 = vdwg.mxu0
      %v854 = vmax.f32 %v840, 0.0
      %v855 = vmax.f32 %v843, 0.0
      %v856 = vmax.f32 %v848, 0.0
      %v857 = vmax.f32 %v851, 0.0
      %v858 = vmin.f32 %v854, 6.0
      %v859 = vmin.f32 %v855, 6.0
      %v860 = vmin.f32 %v856, 6.0
      %v861 = vmin.f32 %v857, 6.0
      %v862 = vld [vmem:[%s11] sm:$0xf]
      %v863 = vld [vmem:[%s11 + $0x4] sm:$0xf]
      %v864 = vld [vmem:[%s11 + $0x8] sm:$0xf]
      %v865 = vld [vmem:[%s11 + $0xc] sm:$0xf]
      %v866 = vpack.c.bf16 %v859, %v858
      %v867 = vpack.c.bf16 %v861, %v860
      %v868 = vld [vmem:[%s12] sm:$0xff]
      %v869 = vld [vmem:[%s12 + $0x8] sm:$0xff]
      %v870 = vld [vmem:[%s12 + $0x10] sm:$0xff]
      %v871 = vld [vmem:[%s12 + $0x18] sm:$0xff]
      %873 = vset.pattern.permute.xlu0 0
      %874 = vperm.xlu0 %873, %v868
      %v875 = vpop.permute.xlu0 %874
      %878 = vset.pattern.permute.xlu0 0
      %879 = vperm.xlu0 %878, %v869
      %v880 = vpop.permute.xlu0 %879
      %883 = vset.pattern.permute.xlu0 0
      %884 = vperm.xlu0 %883, %v870
      %v885 = vpop.permute.xlu0 %884
      %888 = vset.pattern.permute.xlu0 0
      %889 = vperm.xlu0 %888, %v871
      %v890 = vpop.permute.xlu0 %889
      %v896 = vunpack.c.l.b16 %v862
      %v897 = vunpack.c.l.b16 %v863
      %v898 = vunpack.c.l.b16 %v864
      %v899 = vunpack.c.l.b16 %v865
      %v900 = vpack.c.b16 %v897, %v896
      %v901 = vpack.c.b16 %v899, %v898
      %v903 = vsel %vm540, %v900, 0
      %v906 = vsel %vm540, %v901, 0
      %908 = vmatprep.subr.bf16.mxu0 0
      %909 = vmatpush1.bf16.msra.mxu0 %v866
      %910 = vmatprep.subr.bf16.mxu0 0
      %911 = vmatpush1.bf16.msra.mxu0 %v867
      %912 = vmatprep.subr.bf16.mxu0 0
      %913 = vmatpush1.bf16.msra.mxu0 0
      %914 = vmatprep.subr.bf16.mxu0 0
      %915 = vmatpush1.bf16.msra.mxu0 0
      %916 = vmatprep.subr.bf16.mxu0 0
      %917 = vmatpush1.bf16.msra.mxu0 0
      %918 = vmatprep.subr.bf16.mxu0 0
      %919 = vmatpush1.bf16.msra.mxu0 0
      %920 = vmatprep.subr.bf16.mxu0 0
      %921 = vmatpush1.bf16.msra.mxu0 0
      %922 = vmatprep.subr.bf16.mxu0 0
      %923 = vmatpush1.bf16.msra.mxu0 0
      %924 = vmatprep.subr.bf16.mxu0 0
      %925 = vmatpush1.bf16.msra.mxu0 0
      %926 = vmatprep.subr.bf16.mxu0 0
      %927 = vmatpush1.bf16.msra.mxu0 0
      %928 = vmatprep.subr.bf16.mxu0 0
      %929 = vmatpush1.bf16.msra.mxu0 0
      %930 = vmatprep.subr.bf16.mxu0 0
      %931 = vmatpush1.bf16.msra.mxu0 0
      %932 = vmatprep.subr.bf16.mxu0 0
      %933 = vmatpush1.bf16.msra.mxu0 0
      %934 = vmatprep.subr.bf16.mxu0 0
      %935 = vmatpush1.bf16.msra.mxu0 0
      %936 = vmatprep.subr.bf16.mxu0 0
      %937 = vmatpush1.bf16.msra.mxu0 0
      %938 = vmatprep.subr.bf16.mxu0 0
      %939 = vmatpush1.bf16.msra.mxu0 0
      %940 = vmatprep.mubr.bf16.mxu0 0
      %941 = vmatmul.mubr.bf16.gmra.mrb[0].mxu0 %v903
      %v942 = vpop.f32.mrb[0].mxu0
      %v943 = vadd.f32 %v875, %v942
      %v944 = vpop.f32.mrb[0].mxu0
      %v945 = vpop.f32.mrb[0].mxu0
      %v946 = vadd.f32 %v880, %v945
      %v947 = vpop.f32.mrb[0].mxu0
      %948 = vmatprep.mubr.bf16.mxu0 0
      %949 = vmatmul.mubr.bf16.gmra.mrb[0].mxu0 %v906
      %v950 = vpop.f32.mrb[0].mxu0
      %v951 = vadd.f32 %v885, %v950
      %v952 = vpop.f32.mrb[0].mxu0
      %v953 = vpop.f32.mrb[0].mxu0
      %v954 = vadd.f32 %v890, %v953
      %v955 = vpop.f32.mrb[0].mxu0
      %956 = vdwg.mxu0
      %957 = vst.msk [vmem:[%s442] sm:$0xff] %vm467, %v943
      %958 = vst.msk [vmem:[%s442 + $0x8] sm:$0xff] %vm467, %v946
      %959 = vst.msk [vmem:[%s442 + $0x10] sm:$0xff] %vm467, %v951
      %960 = vst.msk [vmem:[%s442 + $0x18] sm:$0xff] %vm467, %v954
      %s961 = smul.u32 4, %s24
      %p962 = scmp.lt.s32.totalorder %s961, 15
      %s963 = scalar_select %p962, %s961, 15
      %s964 = smul.addr %s963, 8
      %s965 = scalar_lea.vmem %s13, %s964
      // Predicated region
      $region73: #{tpu_custom_call.1} parent=71 // pred_check
        %p966 = pneg %p320
      $region74: #{tpu_custom_call.1} parent=71 // pred_check_branch
        %968 = sbr.rel (%p966) target = $region76
      $region75: #{tpu_custom_call.1} parent=71 // pred_region
        %s969 = smul.u32 4, %s24
      $region76: #{tpu_custom_call.1} parent=71 // pred_fallthru
        _
    $region72: #{tpu_custom_call.1} parent=5 // pred_fallthru
      _
    %p970 = scmp.le.s32.totalorder 2, %s19
    // Predicated region
    $region77: #{tpu_custom_call.1} parent=5 // pred_check
      %p971 = pneg %p970
    $region78: #{tpu_custom_call.1} parent=5 // pred_check_branch
      %973 = sbr.rel (%p971) target = $region80
    $region79: #{tpu_custom_call.1} parent=5 // pred_region
      %s974 = ssub.s32 %s19, 2
      // Predicated region
      $region81: #{tpu_custom_call.1} parent=79 // pred_check
        %p975 = pneg %p326
      $region82: #{tpu_custom_call.1} parent=79 // pred_check_branch
        %977 = sbr.rel (%p975) target = $region84
      $region83: #{tpu_custom_call.1} parent=79 // pred_region
        %s978 = smul.u32 4, %s25
        %p979 = scmp.lt.s32.totalorder %s978, 15
        %s980 = scalar_select %p979, %s978, 15
        %s981 = smul.addr %s980, 8
        %s982 = scalar_lea.vmem %s13, %s981
      $region84: #{tpu_custom_call.1} parent=79 // pred_fallthru
        _
    $region80: #{tpu_custom_call.1} parent=5 // pred_fallthru
      _
  $region6: #{tpu_custom_call.1} parent=0 // loop_footer
    %s23 = sadd.s32 1, %s19
  $region7: #{tpu_custom_call.1} parent=0 // loop_footer_branch
    %18 = sbr.rel target = $region3
  $region8: #{tpu_custom_call.1} parent=0 // loop_exit
    _

</llo_original>
